<compile_context>
chip_gen: v7x
topology: tpu7x:2x2x1
jax: 0.10.0
libtpu: 0.0.40
codegen_flags: <defaults>
</compile_context>

<pallas_src>
import functools

import jax
import jax.numpy as jnp
from jax.experimental import pallas as pl
from jax.experimental.pallas import tpu as pltpu

_LANES = 128              # vreg lane width: keep the last dim lane-dense
_SUBLANES = 8             # sublane granularity for f32 blocks
_MAX_BLOCK_ROWS = 2048    # 2048 x 128 x 4 B = 1 MiB per operand block
_PALLAS_MIN_ELEMS = 2048  # below this, let XLA fuse the elementwise expression


def _round_up(x, m):
    return ((x + m - 1) // m) * m


@functools.lru_cache(maxsize=None)
def _make_mask_loss_kernel(fb_in_smem, c_in_smem):
    """Kernel factory: operands are VMEM (block_rows, 128) tiles or (1,) SMEM scalars."""

    def kernel(f_ref, fb_ref, c_ref, o_ref):
        # Straight-line, lane-dense elementwise compute: (F / F_baseline - rate)^2.
        # Scalar operands are read from SMEM and broadcast by the VPU; everything else
        # is a single vector div/sub/mul per element -- purely HBM-bound.
        fb = fb_ref[0] if fb_in_smem else fb_ref[...]
        c = c_ref[0] if c_in_smem else c_ref[...]
        r = f_ref[...] / fb - c
        o_ref[...] = r * r

    return kernel


def mask_loss(Flops, Flops_baseline, compress_rate, *, force_pallas=False):
    """Pallas TPU implementation of MaskLoss.forward.

    Supports scalar or array inputs with NumPy-style broadcasting (same semantics as the
    PyTorch elementwise expression). Returns f32 with the broadcasted shape.
    """
    f = jnp.asarray(Flops, jnp.float32)
    fb = jnp.asarray(Flops_baseline, jnp.float32)
    c = jnp.asarray(compress_rate, jnp.float32)

    out_shape = jnp.broadcast_shapes(f.shape, fb.shape, c.shape)
    total = 1
    for d in out_shape:
        total *= d

    # Small-size (or empty) fast path: launch/plumbing overhead dominates; let XLA fuse it.
    if total == 0 or (not force_pallas and total < _PALLAS_MIN_ELEMS):
        return jnp.square(f / fb - c)

    fb_in_smem = fb.size == 1
    c_in_smem = c.size == 1

    # Lane-dense 2-D packing: (rows, 128).  Pick ~1 MiB blocks, but keep >= 2 blocks when
    # the input is big enough so the "parallel" grid axis can use both v7x TensorCores.
    rows = pl.cdiv(total, _LANES)
    if rows <= _SUBLANES:
        block_rows = _SUBLANES
    else:
        n_blocks = max(2, pl.cdiv(rows, _MAX_BLOCK_ROWS))
        block_rows = min(_MAX_BLOCK_ROWS, _round_up(pl.cdiv(rows, n_blocks), _SUBLANES))
    rows_padded = _round_up(rows, block_rows)
    pad = rows_padded * _LANES - total

    def to_blocks(x, pad_value):
        x = jnp.broadcast_to(x, out_shape).reshape(-1)
        if pad:  # ragged sizes only; 128/block-aligned inputs skip this extra HBM copy
            x = jnp.pad(x, (0, pad), constant_values=pad_value)
        return x.reshape(rows_padded, _LANES)

    block_spec = pl.BlockSpec((block_rows, _LANES), lambda i: (i, 0))
    smem_spec = pl.BlockSpec(memory_space=pltpu.MemorySpace.SMEM)

    operands = [to_blocks(f, 0.0)]
    in_specs = [block_spec]

    if fb_in_smem:
        operands.append(fb.reshape(1))
        in_specs.append(smem_spec)
    else:
        # Pad the denominator with 1.0 so padded lanes never compute 0/0.
        operands.append(to_blocks(fb, 1.0))
        in_specs.append(block_spec)

    if c_in_smem:
        operands.append(c.reshape(1))
        in_specs.append(smem_spec)
    else:
        operands.append(to_blocks(c, 0.0))
        in_specs.append(block_spec)

    out2 = pl.pallas_call(
        _make_mask_loss_kernel(fb_in_smem, c_in_smem),
        out_shape=jax.ShapeDtypeStruct((rows_padded, _LANES), jnp.float32),
        grid=(rows_padded // block_rows,),
        in_specs=in_specs,
        out_specs=block_spec,
        compiler_params=pltpu.CompilerParams(
            dimension_semantics=("parallel",),  # megacore sharding on v7x; harmless elsewhere
        ),
    )(*operands)

    out = out2.reshape(-1)
    if pad:
        out = out[:total]
    return out.reshape(out_shape)


def _mask_loss_ref(Flops, Flops_baseline, compress_rate):
    """Pure-JAX reference mirroring the PyTorch module."""
    return jnp.power(
        jnp.asarray(Flops, jnp.float32) / jnp.asarray(Flops_baseline, jnp.float32)
        - jnp.asarray(compress_rate, jnp.float32),
        2,
    )


if __name__ == "__main__":
    key = jax.random.PRNGKey(0)
    k0, k1, k2, k3 = jax.random.split(key, 4)

    # Case 1: small per-layer FLOP table (8 layers x 32 mask configs) vs. baseline table,
    #         scalar compress rate.  force_pallas=True so the Pallas kernel is exercised
    #         even though this size would normally take the fused-XLA fast path.
    f1 = jax.random.uniform(k0, (8, 32), jnp.float32, 1.0, 2.0) * 1e6
    b1 = jax.random.uniform(k1, (8, 32), jnp.float32, 1.0, 2.0) * 1e6
    r1 = jnp.float32(0.5)
    o1 = mask_loss(f1, b1, r1, force_pallas=True)

    # Case 2: 128-aligned case (no wrapper padding); scalar baseline and scalar rate ride
    #         in SMEM -- only one HBM read stream plus the output write.
    f2_ = jax.random.uniform(k2, (16, 1024), jnp.float32, 1.0, 2.0) * 1e6
    b2 = jnp.float32(3.0e6)
    r2 = jnp.float32(0.25)
    o2 = mask_loss(f2_, b2, r2)

    # Case 3: all-array operands streamed through VMEM blocks (2-block grid).
    c3 = jnp.full((16, 1024), 0.5, jnp.float32)
    f3 = jax.random.uniform(k3, (16, 1024), jnp.float32, 1.0, 2.0) * 1e6
    o3 = mask_loss(f3, f2_, c3)

    jax.block_until_ready((o1, o2, o3))

    checks = (
        (o1, _mask_loss_ref(f1, b1, r1)),
        (o2, _mask_loss_ref(f2_, b2, r2)),
        (o3, _mask_loss_ref(f3, f2_, c3)),
    )
    for got, ref in checks:
        assert got.shape == ref.shape, (got.shape, ref.shape)
        assert jnp.allclose(got, ref, atol=1e-6, rtol=1e-5), (got, ref)

    print("KERNEL_OK")
</pallas_src>

<mosaic_0001>
module attributes {stable_mosaic.version = 11 : i64} {
  func.func @kernel(%arg0: i32, %arg1: memref<8x128xf32, #tpu.memory_space<vmem>>, %arg2: memref<8x128xf32, #tpu.memory_space<vmem>>, %arg3: memref<1xf32, #tpu.memory_space<smem>>, %arg4: memref<8x128xf32, #tpu.memory_space<vmem>>) attributes {dimension_semantics = [#tpu.dimension_semantics<parallel>], iteration_bounds = array<i64: 1>, scalar_prefetch = 0 : i64, scratch_operands = 0 : i64, tpu.core_type = #tpu.core_type<tc>, window_params = [{transform_indices = @transform_0, window_bounds = array<i64: 8, 128>}, {transform_indices = @transform_1, window_bounds = array<i64: 8, 128>}, {transform_indices = @transform_2, window_bounds = array<i64: 1>}, {transform_indices = @transform_3, window_bounds = array<i64: 8, 128>}]} {
    %c0 = arith.constant 0 : index
    %c0_0 = arith.constant 0 : index
    %0 = vector.load %arg2[%c0, %c0_0] : memref<8x128xf32, #tpu.memory_space<vmem>>, vector<8x128xf32>
    %c0_1 = arith.constant 0 : index
    %1 = memref.load %arg3[%c0_1] : memref<1xf32, #tpu.memory_space<smem>>
    %c0_2 = arith.constant 0 : index
    %c0_3 = arith.constant 0 : index
    %2 = vector.load %arg1[%c0_2, %c0_3] : memref<8x128xf32, #tpu.memory_space<vmem>>, vector<8x128xf32>
    %3 = arith.divf %2, %0 : vector<8x128xf32>
    %4 = vector.broadcast %1 : f32 to vector<8x128xf32>
    %5 = arith.subf %3, %4 : vector<8x128xf32>
    %6 = arith.mulf %5, %5 : vector<8x128xf32>
    %c0_4 = arith.constant 0 : index
    %c0_5 = arith.constant 0 : index
    %7 = vector.load %arg4[%c0_4, %c0_5] : memref<8x128xf32, #tpu.memory_space<vmem>>, vector<8x128xf32>
    tpu.vector_store %arg4[%c0_4, %c0_5], %6 {strides = array<i32>} : memref<8x128xf32, #tpu.memory_space<vmem>>, vector<8x128xf32>,
    return
  }
  func.func @transform_0(%arg0: i32) -> (i32, i32) {
    %c0_i32 = arith.constant 0 : i32
    %c0_i32_0 = arith.constant 0 : i32
    return %arg0, %c0_i32 : i32, i32
  }
  func.func @transform_1(%arg0: i32) -> (i32, i32) {
    %c0_i32 = arith.constant 0 : i32
    %c0_i32_0 = arith.constant 0 : i32
    return %arg0, %c0_i32 : i32, i32
  }
  func.func @transform_2(%arg0: i32) -> i32 {
    %c0_i32 = arith.constant 0 : i32
    %c0_i32_0 = arith.constant 0 : i32
    return %c0_i32 : i32
  }
  func.func @transform_3(%arg0: i32) -> (i32, i32) {
    %c0_i32 = arith.constant 0 : i32
    %c0_i32_0 = arith.constant 0 : i32
    return %arg0, %c0_i32 : i32, i32
  }
}

</mosaic_0001>

<llo_original>
// kernel: tpu_custom_call.1
$region0: #{tpu_custom_call.1}
  #allocation0 [shape = 'u32[]', space=smem, size = 0x4, offset = 0x4, fixed_abs, tag = 'smem constant byte address 0x4 - core index']
  #allocation1 [shape = 'u32[144,128]{1,0:T(1,128)}', space=vmem, size = 0x12000, scoped, tag = 'internal scratch']
  #allocation2 [shape = 'f32[1]{0:T(128)S(6)}', space=smem, size = 0x200, scoped, tag = 'scoped memory for tpu_custom_call.1']
  %s0 = inlined_call_operand.hbm [shape: f32[8,128], index: 0, kind: input, shape index: {}]
  %s1 = inlined_call_operand.hbm [shape: f32[8,128], index: 1, kind: input, shape index: {}]
  %s2 = inlined_call_operand.<no memory space> [shape: f32[1], index: 2, kind: input, shape index: {}]
  %s3 = inlined_call_operand.hbm [shape: f32[8,128], index: 3, kind: output, shape index: {}]
  %s4 = sld [smem:[#allocation0]]
  $region30: #{tpu_custom_call.1} parent=0
    _
  %s6 = ssub.s32 1, %s4
  %s7 = scalar_select 0, %s6, %s4
  %8 = sst [smem:[#allocation2]] %s2
  $region1: #{tpu_custom_call.1} parent=0
    #allocation3 [shape = 'u8[4096]{0}', space=vmem, size = 0x1000, scoped, tag = 'input window, operand 0, single buffered']
    #allocation4 [shape = 's32[1]{0}', space=sflag, size = 0x4, scoped, tag = 'scoped memory for tpu_custom_call.1']
    #allocation5 [shape = 's32[1]{0}', space=sflag, size = 0x4, scoped, tag = 'scoped memory for tpu_custom_call.1']
    #allocation6 [shape = 'u8[4096]{0}', space=vmem, size = 0x1000, scoped, tag = 'input window, operand 1, single buffered']
    #allocation7 [shape = 's32[1]{0}', space=sflag, size = 0x4, scoped, tag = 'scoped memory for tpu_custom_call.1']
    #allocation8 [shape = 'u8[4096]{0}', space=vmem, size = 0x1000, scoped, tag = 'output window, operand 0, single buffered']
    %9 = vsyncpa [#allocation4], 0
    %10 = vsyncpa [#allocation7], 0
    %11 = vsyncpa [#allocation5], 0
    // Predicated region
    $region2: #{tpu_custom_call.1} parent=1 // pred_check
      _
    $region3: #{tpu_custom_call.1} parent=1 // pred_check_branch
      %13 = sbr.rel (0) target = $region5
    $region4: #{tpu_custom_call.1} parent=1 // pred_region
      %s15 = ssub.s32 128, 128
      %16 = vsyncadd [#allocation4], %s15
      %s18 = sshll.u32 [#allocation3], 4
      %s19 = int_to_ptr.vmem [resolvable:$true] %s18
      %21 = dma.hbm_to_vmem [thread:$0]  %s0, 128, %s19, [#allocation4]
    $region5: #{tpu_custom_call.1} parent=1 // pred_fallthru
      _
    // Predicated region
    $region6: #{tpu_custom_call.1} parent=1 // pred_check
      _
    $region7: #{tpu_custom_call.1} parent=1 // pred_check_branch
      %23 = sbr.rel (0) target = $region9
    $region8: #{tpu_custom_call.1} parent=1 // pred_region
      %s25 = ssub.s32 128, 128
      %26 = vsyncadd [#allocation7], %s25
      %s28 = sshll.u32 [#allocation6], 4
      %s29 = int_to_ptr.vmem [resolvable:$true] %s28
      %31 = dma.hbm_to_vmem [thread:$0]  %s1, 128, %s29, [#allocation7]
    $region9: #{tpu_custom_call.1} parent=1 // pred_fallthru
      _
    // Predicated region
    $region10: #{tpu_custom_call.1} parent=1 // pred_check
      _
    $region11: #{tpu_custom_call.1} parent=1 // pred_check_branch
      %33 = sbr.rel (0) target = $region13
    $region12: #{tpu_custom_call.1} parent=1 // pred_region
      _
    $region13: #{tpu_custom_call.1} parent=1 // pred_fallthru
      _
    // Predicated region
    $region14: #{tpu_custom_call.1} parent=1 // pred_check
      _
    $region15: #{tpu_custom_call.1} parent=1 // pred_check_branch
      %35 = sbr.rel (0) target = $region17
    $region16: #{tpu_custom_call.1} parent=1 // pred_region
      %36 = dma.done [#allocation4], 128
    $region17: #{tpu_custom_call.1} parent=1 // pred_fallthru
      _
    // Predicated region
    $region18: #{tpu_custom_call.1} parent=1 // pred_check
      _
    $region19: #{tpu_custom_call.1} parent=1 // pred_check_branch
      %38 = sbr.rel (0) target = $region21
    $region20: #{tpu_custom_call.1} parent=1 // pred_region
      %39 = dma.done [#allocation7], 128
    $region21: #{tpu_custom_call.1} parent=1 // pred_fallthru
      _
    %v40 = vld [vmem:[#allocation6] sm:$0xff]
    %s41 = sld [smem:[#allocation2]]
    %v42 = vld [vmem:[#allocation3] sm:$0xff]
    %v43 = vrcp.pop %v40
    %v44 = vmul.f32 %v42, %v43
    %v45 = vstv %s41
    %v46 = vsub.f32 %v44, %v45
    %v47 = vmul.f32 %v46, %v46
    %48 = vst [vmem:[#allocation8] sm:$0xff] %v47
    // Predicated region
    $region22: #{tpu_custom_call.1} parent=1 // pred_check
      _
    $region23: #{tpu_custom_call.1} parent=1 // pred_check_branch
      %50 = sbr.rel (0) target = $region25
    $region24: #{tpu_custom_call.1} parent=1 // pred_region
      %s52 = ssub.s32 128, 128
      %53 = vsyncadd [#allocation5], %s52
      %s55 = sshll.u32 [#allocation8], 4
      %s56 = int_to_ptr.vmem [resolvable:$true] %s55
      %58 = dma.vmem_to_hbm [thread:$0]  %s56, 128, %s3, [#allocation5]
    $region25: #{tpu_custom_call.1} parent=1 // pred_fallthru
      _
    // Predicated region
    $region26: #{tpu_custom_call.1} parent=1 // pred_check
      _
    $region27: #{tpu_custom_call.1} parent=1 // pred_check_branch
      %60 = sbr.rel (0) target = $region29
    $region28: #{tpu_custom_call.1} parent=1 // pred_region
      %61 = dma.done [#allocation5], 128
    $region29: #{tpu_custom_call.1} parent=1 // pred_fallthru
      _
    %62 = vsyncpa [#allocation4], 1
    %63 = vsyncpa [#allocation7], 1
    %64 = vsyncpa [#allocation5], 1

</llo_original>
